<compile_context>
chip_gen: v7x
topology: tpu7x:2x2x1
jax: 0.10.0
libtpu: 0.0.40
codegen_flags: <defaults>
</compile_context>

<pallas_src>
import functools

import jax
import jax.numpy as jnp
from jax.experimental import pallas as pl
from jax.experimental.pallas import tpu as pltpu

_LANE = 128
_MAX_TILE = 32768               # upper bound on the spatial (lane) tile
_TARGET_STEP_BYTES = 1 << 20    # aim for >= ~1 MiB of activations per grid step


def _classwise_pool_kernel(x_ref, w_ref, b_ref, o_ref, acc_ref, *, nb):
    """One grid step of the fused 1x1-conv + modality-mean.

    x_ref:   (nb, Ck, T)  activations: Cin-slice x spatial tile for nb images
    w_ref:   (C,  Ck)     modality-mean-fused 1x1-conv weights (Cin-slice)
    b_ref:   (C,  1)      fused bias (f32)
    o_ref:   (nb, C,  T)  output tile (input dtype)
    acc_ref: (nb, C,  T)  f32 accumulator, resident across the Cin grid axis
    """
    k = pl.program_id(2)

    @pl.when(k == 0)
    def _init():
        acc_ref[...] = jnp.zeros_like(acc_ref)

    w = w_ref[...]
    for i in range(nb):                      # static unroll, nb <= 8
        acc_ref[i, :, :] += jnp.dot(w, x_ref[i, :, :],
                                    preferred_element_type=jnp.float32)

    @pl.when(k == pl.num_programs(2) - 1)
    def _store():
        o_ref[...] = (acc_ref[...] + b_ref[...][None, :, :]).astype(o_ref.dtype)


def _round_up(v, m):
    return -(-v // m) * m


def _buf_bytes(shape, itemsize):
    """VMEM footprint of one buffer, including (sublane, lane) tile padding."""
    *lead, s, l = shape
    sub = 8 * max(1, 4 // itemsize)          # 8 for f32, 16 for bf16, 32 for i8
    n = 1
    for d in lead:
        n *= d
    return n * _round_up(max(s, 1), sub) * _round_up(max(l, 1), _LANE) * itemsize


def class_wise_pooling(x, weight, bias, classes, modalities):
    """x: (N, Cin, H, W); weight: (C*M, Cin, 1, 1); bias: (C*M,) -> (N, C, H, W)."""
    N, Cin, H, W = x.shape
    C, M = int(classes), int(modalities)
    CM = C * M
    assert weight.shape == (CM, Cin, 1, 1)
    assert bias.shape == (CM,)

    HW = H * W
    x_dt = x.dtype
    x_b = jnp.dtype(x_dt).itemsize
    f32_b = 4

    # --- Fuse the modality mean into the conv parameters (linear op). -------
    w_eff = weight.reshape(C, M, Cin).astype(jnp.float32).mean(axis=1)  # (C, Cin)
    b_eff = bias.reshape(C, M).astype(jnp.float32).mean(axis=1)         # (C,)
    w_eff = w_eff.astype(x_dt)               # matmul stays in the wire dtype
    b_eff = b_eff.reshape(C, 1)              # bias stays f32 (epilogue is f32)

    # NCHW -> (N, Cin, H*W): layout-preserving reshape, no transpose, no cast.
    x_flat = x.reshape(N, Cin, HW)

    # --- Generation-aware VMEM budget. ---------------------------------------
    try:
        vmem_cap = int(pltpu.get_tpu_info().vmem_capacity_bytes)
    except Exception:
        vmem_cap = 64 * 1024 * 1024           # conservative fallback (v7x size)
    budget = (vmem_cap * 3) // 4              # leave 25% for Mosaic scratch

    def vmem_needed(nb_, ck_, t_):
        return (2 * _buf_bytes((nb_, ck_, t_), x_b)      # x blocks (double-buf)
                + 2 * _buf_bytes((C, ck_), x_b)          # w blocks
                + 2 * _buf_bytes((C, 1), f32_b)          # b blocks
                + 2 * _buf_bytes((nb_, C, t_), x_b)      # out blocks
                + _buf_bytes((nb_, C, t_), f32_b))       # f32 accumulator

    # --- Spatial (lane) tile: prefer the full row -> no padding, no raggedness.
    # (A block dim equal to the full array dim is exempt from the 128 rule.
    #  If HW is huge we tile with a multiple of 128; the ragged tail is
    #  handled by masked boundary stores — no wrapper-side pad/slice.)
    tile = HW if HW <= _MAX_TILE else _MAX_TILE

    # --- Batch block: lift tiny per-step payloads (small Cin) toward ~1 MiB. -
    nb = 1
    for d in range(1, min(N, 8) + 1):
        if N % d == 0:
            nb = d
            if d * Cin * tile * x_b >= _TARGET_STEP_BYTES:
                break

    # --- Cin (K) tile: full Cin if it fits, else a multiple-of-128 divisor. --
    ck = Cin
    if vmem_needed(nb, ck, tile) > budget and Cin >= _LANE:
        for d in range(Cin // _LANE, 0, -1):
            cand = d * _LANE
            if Cin % cand == 0 and vmem_needed(nb, cand, tile) <= budget:
                ck = cand
                break

    # --- Last resorts: shrink the spatial tile / batch block (never clamp the
    #     VMEM limit below what the blocks actually need). ---------------------
    while vmem_needed(nb, ck, tile) > budget and tile > _LANE:
        tile = max(_LANE, _round_up(tile // 2, _LANE))
    while vmem_needed(nb, ck, tile) > budget and nb > 1:
        nb = max(d for d in range(1, nb) if N % d == 0)

    needed = vmem_needed(nb, ck, tile)
    vmem_limit = int(min(budget, max(2 * needed, 32 * 1024 * 1024)))

    grid = (N // nb, pl.cdiv(HW, tile), Cin // ck)
    kernel = functools.partial(_classwise_pool_kernel, nb=nb)

    out_flat = pl.pallas_call(
        kernel,
        out_shape=jax.ShapeDtypeStruct((N, C, HW), x_dt),
        grid_spec=pltpu.PrefetchScalarGridSpec(
            num_scalar_prefetch=0,
            grid=grid,
            in_specs=[
                pl.BlockSpec((nb, ck, tile), lambda n, s, k: (n, k, s)),
                # TODO(synk): pipeline_mode=pl.Buffered(1) on w/b (constant
                # index maps) would halve their resident VMEM on v7x; left at
                # the default buffering for lowering portability.
                pl.BlockSpec((C, ck), lambda n, s, k: (0, k)),
                pl.BlockSpec((C, 1), lambda n, s, k: (0, 0)),
            ],
            out_specs=pl.BlockSpec((nb, C, tile), lambda n, s, k: (n, 0, s)),
            scratch_shapes=[pltpu.VMEM((nb, C, tile), jnp.float32)],
        ),
        compiler_params=pltpu.CompilerParams(
            dimension_semantics=("parallel", "parallel", "arbitrary"),
            vmem_limit_bytes=vmem_limit),
    )(x_flat, w_eff, b_eff)

    # (N, C, H*W) -> (N, C, H, W): free reshape, no slicing, no transpose.
    return out_flat.reshape(N, C, H, W)


if __name__ == "__main__":
    key = jax.random.PRNGKey(0)
    k_x, k_w, k_b = jax.random.split(key, 3)

    N, Cin, H, W = 2, 4, 16, 16
    classes, modalities = 3, 4
    CM = classes * modalities

    x = jax.random.normal(k_x, (N, Cin, H, W), dtype=jnp.float32)
    weight = jax.random.normal(k_w, (CM, Cin, 1, 1), dtype=jnp.float32) * 0.1
    bias = jax.random.normal(k_b, (CM,), dtype=jnp.float32) * 0.1

    out = class_wise_pooling(x, weight, bias, classes, modalities)
    out = jax.block_until_ready(out)

    # Pure-JAX reference of the PyTorch forward for verification.
    conv = jnp.einsum("nchw,oc->nohw", x, weight.reshape(CM, Cin)) \
        + bias.reshape(1, CM, 1, 1)
    ref = conv.reshape(N, classes, modalities, H, W).mean(axis=2)

    assert out.shape == (N, classes, H, W)
    err = float(jnp.max(jnp.abs(out - ref)))
    assert jnp.allclose(out, ref, atol=1e-5, rtol=1e-5), err

    print("KERNEL_OK")
</pallas_src>

<mosaic_0001>
module attributes {stable_mosaic.version = 11 : i64} {
  func.func @_classwise_pool_kernel(%arg0: i32, %arg1: i32, %arg2: i32, %arg3: memref<2x4x256xf32, #tpu.memory_space<vmem>>, %arg4: memref<3x4xf32, #tpu.memory_space<vmem>>, %arg5: memref<3x1xf32, #tpu.memory_space<vmem>>, %arg6: memref<2x3x256xf32, #tpu.memory_space<vmem>>, %arg7: memref<2x3x256xf32, #tpu.memory_space<vmem>>) attributes {dimension_semantics = [#tpu.dimension_semantics<parallel>, #tpu.dimension_semantics<parallel>, #tpu.dimension_semantics<arbitrary>], iteration_bounds = array<i64: 1, 1, 1>, scalar_prefetch = 0 : i64, scratch_operands = 1 : i64, tpu.core_type = #tpu.core_type<tc>, window_params = [{transform_indices = @transform_0, window_bounds = array<i64: 2, 4, 256>}, {transform_indices = @transform_1, window_bounds = array<i64: 3, 4>}, {pipeline_mode = #tpu.pipeline_mode<synchronous>, transform_indices = @transform_2, window_bounds = array<i64: 3, 1>}, {transform_indices = @transform_3, window_bounds = array<i64: 2, 3, 256>}]} {
    %c0_i32 = arith.constant 0 : i32
    %0 = arith.cmpi eq, %arg2, %c0_i32 : i32
    %1 = arith.extui %0 : i1 to i32
    %c0_i32_0 = arith.constant 0 : i32
    %2 = arith.cmpi ne, %1, %c0_i32_0 : i32
    scf.if %2 {
      %cst_22 = arith.constant 0.000000e+00 : f32
      %25 = vector.broadcast %cst_22 : f32 to vector<2x3x256xf32>
      %c0_23 = arith.constant 0 : index
      %c0_24 = arith.constant 0 : index
      %c0_25 = arith.constant 0 : index
      %26 = vector.load %arg7[%c0_23, %c0_24, %c0_25] : memref<2x3x256xf32, #tpu.memory_space<vmem>>, vector<2x3x256xf32>
      tpu.vector_store %arg7[%c0_23, %c0_24, %c0_25], %25 {strides = array<i32>} : memref<2x3x256xf32, #tpu.memory_space<vmem>>, vector<2x3x256xf32>,
    } else {
    }
    %c0 = arith.constant 0 : index
    %c0_1 = arith.constant 0 : index
    %3 = vector.load %arg4[%c0, %c0_1] : memref<3x4xf32, #tpu.memory_space<vmem>>, vector<3x4xf32>
    %c0_2 = arith.constant 0 : index
    %c0_3 = arith.constant 0 : index
    %c0_4 = arith.constant 0 : index
    %4 = vector.load %arg7[%c0_2, %c0_3, %c0_4] : memref<2x3x256xf32, #tpu.memory_space<vmem>>, vector<1x3x256xf32>
    %5 = vector.shape_cast %4 : vector<1x3x256xf32> to vector<3x256xf32>
    %c0_5 = arith.constant 0 : index
    %c0_6 = arith.constant 0 : index
    %c0_7 = arith.constant 0 : index
    %6 = vector.load %arg3[%c0_5, %c0_6, %c0_7] : memref<2x4x256xf32, #tpu.memory_space<vmem>>, vector<1x4x256xf32>
    %7 = vector.shape_cast %6 : vector<1x4x256xf32> to vector<4x256xf32>
    %cst = arith.constant dense<0.000000e+00> : vector<3x256xf32>
    %8 = tpu.matmul %3, %7, %cst {dimension_numbers = #tpu.dot_dimension_numbers<[1], [0], [0], [1], [0, 0, 1, 1], [], []>} : vector<3x4xf32>, vector<4x256xf32>, vector<3x256xf32> -> vector<3x256xf32>
    %9 = arith.addf %5, %8 : vector<3x256xf32>
    %c0_8 = arith.constant 0 : index
    %c0_9 = arith.constant 0 : index
    %c0_10 = arith.constant 0 : index
    %10 = vector.load %arg7[%c0_8, %c0_9, %c0_10] : memref<2x3x256xf32, #tpu.memory_space<vmem>>, vector<1x3x256xf32>
    %11 = vector.shape_cast %10 : vector<1x3x256xf32> to vector<3x256xf32>
    %12 = vector.shape_cast %9 : vector<3x256xf32> to vector<1x3x256xf32>
    tpu.vector_store %arg7[%c0_8, %c0_9, %c0_10], %12 {strides = array<i32>} : memref<2x3x256xf32, #tpu.memory_space<vmem>>, vector<1x3x256xf32>,
    %c1 = arith.constant 1 : index
    %c0_11 = arith.constant 0 : index
    %c0_12 = arith.constant 0 : index
    %13 = vector.load %arg7[%c1, %c0_11, %c0_12] : memref<2x3x256xf32, #tpu.memory_space<vmem>>, vector<1x3x256xf32>
    %14 = vector.shape_cast %13 : vector<1x3x256xf32> to vector<3x256xf32>
    %c1_13 = arith.constant 1 : index
    %c0_14 = arith.constant 0 : index
    %c0_15 = arith.constant 0 : index
    %15 = vector.load %arg3[%c1_13, %c0_14, %c0_15] : memref<2x4x256xf32, #tpu.memory_space<vmem>>, vector<1x4x256xf32>
    %16 = vector.shape_cast %15 : vector<1x4x256xf32> to vector<4x256xf32>
    %cst_16 = arith.constant dense<0.000000e+00> : vector<3x256xf32>
    %17 = tpu.matmul %3, %16, %cst_16 {dimension_numbers = #tpu.dot_dimension_numbers<[1], [0], [0], [1], [0, 0, 1, 1], [], []>} : vector<3x4xf32>, vector<4x256xf32>, vector<3x256xf32> -> vector<3x256xf32>
    %18 = arith.addf %14, %17 : vector<3x256xf32>
    %c1_17 = arith.constant 1 : index
    %c0_18 = arith.constant 0 : index
    %c0_19 = arith.constant 0 : index
    %19 = vector.load %arg7[%c1_17, %c0_18, %c0_19] : memref<2x3x256xf32, #tpu.memory_space<vmem>>, vector<1x3x256xf32>
    %20 = vector.shape_cast %19 : vector<1x3x256xf32> to vector<3x256xf32>
    %21 = vector.shape_cast %18 : vector<3x256xf32> to vector<1x3x256xf32>
    tpu.vector_store %arg7[%c1_17, %c0_18, %c0_19], %21 {strides = array<i32>} : memref<2x3x256xf32, #tpu.memory_space<vmem>>, vector<1x3x256xf32>,
    %c0_i32_20 = arith.constant 0 : i32
    %22 = arith.cmpi eq, %arg2, %c0_i32_20 : i32
    %23 = arith.extui %22 : i1 to i32
    %c0_i32_21 = arith.constant 0 : i32
    %24 = arith.cmpi ne, %23, %c0_i32_21 : i32
    scf.if %24 {
      %c0_22 = arith.constant 0 : index
      %c0_23 = arith.constant 0 : index
      %c0_24 = arith.constant 0 : index
      %25 = vector.load %arg7[%c0_22, %c0_23, %c0_24] : memref<2x3x256xf32, #tpu.memory_space<vmem>>, vector<2x3x256xf32>
      %c0_25 = arith.constant 0 : index
      %c0_26 = arith.constant 0 : index
      %26 = vector.load %arg5[%c0_25, %c0_26] : memref<3x1xf32, #tpu.memory_space<vmem>>, vector<3x1xf32>
      %27 = vector.shape_cast %26 : vector<3x1xf32> to vector<1x3x1xf32>
      %28 = vector.broadcast %27 : vector<1x3x1xf32> to vector<2x3x256xf32>
      %29 = arith.addf %25, %28 : vector<2x3x256xf32>
      %c0_27 = arith.constant 0 : index
      %c0_28 = arith.constant 0 : index
      %c0_29 = arith.constant 0 : index
      %30 = vector.load %arg6[%c0_27, %c0_28, %c0_29] : memref<2x3x256xf32, #tpu.memory_space<vmem>>, vector<2x3x256xf32>
      tpu.vector_store %arg6[%c0_27, %c0_28, %c0_29], %29 {strides = array<i32>} : memref<2x3x256xf32, #tpu.memory_space<vmem>>, vector<2x3x256xf32>,
    } else {
    }
    return
  }
  func.func @transform_0(%arg0: i32, %arg1: i32, %arg2: i32) -> (i32, i32, i32) {
    %c0_i32 = arith.constant 0 : i32
    return %arg0, %arg2, %arg1 : i32, i32, i32
  }
  func.func @transform_1(%arg0: i32, %arg1: i32, %arg2: i32) -> (i32, i32) {
    %c0_i32 = arith.constant 0 : i32
    %c0_i32_0 = arith.constant 0 : i32
    return %c0_i32, %arg2 : i32, i32
  }
  func.func @transform_2(%arg0: i32, %arg1: i32, %arg2: i32) -> (i32, i32) {
    %c0_i32 = arith.constant 0 : i32
    %c0_i32_0 = arith.constant 0 : i32
    %c0_i32_1 = arith.constant 0 : i32
    return %c0_i32, %c0_i32_0 : i32, i32
  }
  func.func @transform_3(%arg0: i32, %arg1: i32, %arg2: i32) -> (i32, i32, i32) {
    %c0_i32 = arith.constant 0 : i32
    %c0_i32_0 = arith.constant 0 : i32
    return %arg0, %c0_i32, %arg1 : i32, i32, i32
  }
}

</mosaic_0001>

<llo_original>
// kernel: tpu_custom_call.1
$region0: #{tpu_custom_call.1}
  #allocation0 [shape = 'u32[]', space=smem, size = 0x4, offset = 0x4, fixed_abs, tag = 'smem constant byte address 0x4 - core index']
  #allocation1 [shape = 'u32[144,128]{1,0:T(1,128)}', space=vmem, size = 0x12000, scoped, tag = 'internal scratch']
  #allocation2 [shape = 'f32[2,3,256]{2,1,0:T(4,128)}', space=vmem, size = 0x2000, scoped, tag = 'scratch operand']
  %s0 = inlined_call_operand.hbm [shape: f32[2,4,256], index: 0, kind: input, shape index: {}]
  %s1 = inlined_call_operand.vmem [shape: f32[3,4], index: 1, kind: input, shape index: {}]
  %s2 = inlined_call_operand.vmem [shape: f32[3,1], index: 2, kind: input, shape index: {}]
  %s3 = inlined_call_operand.vmem [shape: f32[2,3,256], index: 3, kind: output, shape index: {}]
  %s4 = sld [smem:[#allocation0]]
  $region34: #{tpu_custom_call.1} parent=0
    _
  %s6 = ssub.s32 1, %s4
  %s7 = scalar_select 0, %s6, %s4
  $region1: #{tpu_custom_call.1} parent=0
    #allocation3 [shape = 'u8[8192]{0}', space=vmem, size = 0x2000, scoped, tag = 'input window, operand 0, single buffered']
    #allocation4 [shape = 's32[1]{0}', space=sflag, size = 0x4, scoped, tag = 'scoped memory for tpu_custom_call.1']
    %8 = vsyncpa [#allocation4], 0
    // Predicated region
    $region2: #{tpu_custom_call.1} parent=1 // pred_check
      _
    $region3: #{tpu_custom_call.1} parent=1 // pred_check_branch
      %10 = sbr.rel (0) target = $region5
    $region4: #{tpu_custom_call.1} parent=1 // pred_region
      %s12 = ssub.s32 256, 256
      %13 = vsyncadd [#allocation4], %s12
      %s14 = sshll.u32 [#allocation3], 4
      %s15 = int_to_ptr.vmem [resolvable:$true] %s14
      %20 = dma.hbm_to_vmem [thread:$0]  %s0, 256, %s15, [#allocation4], 128, 128, 8
    $region5: #{tpu_custom_call.1} parent=1 // pred_fallthru
      _
    // Predicated region
    $region6: #{tpu_custom_call.1} parent=1 // pred_check
      _
    $region7: #{tpu_custom_call.1} parent=1 // pred_check_branch
      %22 = sbr.rel (0) target = $region9
    $region8: #{tpu_custom_call.1} parent=1 // pred_region
      _
    $region9: #{tpu_custom_call.1} parent=1 // pred_fallthru
      _
    // Predicated region
    $region10: #{tpu_custom_call.1} parent=1 // pred_check
      _
    $region11: #{tpu_custom_call.1} parent=1 // pred_check_branch
      %24 = sbr.rel (0) target = $region13
    $region12: #{tpu_custom_call.1} parent=1 // pred_region
      _
    $region13: #{tpu_custom_call.1} parent=1 // pred_fallthru
      _
    // Predicated region
    $region14: #{tpu_custom_call.1} parent=1 // pred_check
      _
    $region15: #{tpu_custom_call.1} parent=1 // pred_check_branch
      %26 = sbr.rel (0) target = $region17
    $region16: #{tpu_custom_call.1} parent=1 // pred_region
      %27 = dma.done [#allocation4], 256
    $region17: #{tpu_custom_call.1} parent=1 // pred_fallthru
      _
    %p28 = scmp.eq.s32.totalorder 0, 0
    // Predicated region
    $region18: #{tpu_custom_call.1} parent=1 // pred_check
      %p29 = pneg %p28
    $region19: #{tpu_custom_call.1} parent=1 // pred_check_branch
      %31 = sbr.rel (%p29) target = $region21
    $region20: #{tpu_custom_call.1} parent=1 // pred_region
      %32 = vst [vmem:[#allocation2] sm:$0x77] 0.0
      %33 = vst [vmem:[#allocation2 + $0x8] sm:$0x77] 0.0
    $region21: #{tpu_custom_call.1} parent=1 // pred_fallthru
      _
    %v34 = vld [vmem:[%s1] sm:$0x7]
    %v35 = vld [vmem:[#allocation2] sm:$0x77]
    %v36 = vld [vmem:[#allocation3] sm:$0xff]
    %v38 = vcombine.high %v36, %v36
    %vm39 = vcmask 31744
    %v41 = vsel %vm39, %v34, 0
    %vm43 = vcmask 1043456
    %v44 = vsel %vm43, %v36, 0
    %v46 = vsel %vm43, %v38, 0
    %48 = vmatprep.subr.mxu0 %v46
    %49 = vmatpush1.msra.mxu0 %v44
    %50 = vmatprep.subr.mxu0 0.0
    %51 = vmatpush1.msra.mxu0 0.0
    %52 = vmatprep.subr.mxu0 0.0
    %53 = vmatpush1.msra.mxu0 0.0
    %54 = vmatprep.subr.mxu0 0.0
    %55 = vmatpush1.msra.mxu0 0.0
    %56 = vmatprep.subr.mxu0 0.0
    %57 = vmatpush1.msra.mxu0 0.0
    %58 = vmatprep.subr.mxu0 0.0
    %59 = vmatpush1.msra.mxu0 0.0
    %60 = vmatprep.subr.mxu0 0.0
    %61 = vmatpush1.msra.mxu0 0.0
    %62 = vmatprep.subr.mxu0 0.0
    %63 = vmatpush1.msra.mxu0 0.0
    %64 = vmatprep.subr.mxu0 0.0
    %65 = vmatpush1.msra.mxu0 0.0
    %66 = vmatprep.subr.mxu0 0.0
    %67 = vmatpush1.msra.mxu0 0.0
    %68 = vmatprep.subr.mxu0 0.0
    %69 = vmatpush1.msra.mxu0 0.0
    %70 = vmatprep.subr.mxu0 0.0
    %71 = vmatpush1.msra.mxu0 0.0
    %72 = vmatprep.subr.mxu0 0.0
    %73 = vmatpush1.msra.mxu0 0.0
    %74 = vmatprep.subr.mxu0 0.0
    %75 = vmatpush1.msra.mxu0 0.0
    %76 = vmatprep.subr.mxu0 0.0
    %77 = vmatpush1.msra.mxu0 0.0
    %78 = vmatprep.subr.mxu0 0.0
    %79 = vmatpush1.msra.mxu0 0.0
    %80 = vmatprep.subr.mxu0 0.0
    %81 = vmatpush1.msra.mxu0 0.0
    %82 = vmatprep.subr.mxu0 0.0
    %83 = vmatpush1.msra.mxu0 0.0
    %84 = vmatprep.subr.mxu0 0.0
    %85 = vmatpush1.msra.mxu0 0.0
    %86 = vmatprep.subr.mxu0 0.0
    %87 = vmatpush1.msra.mxu0 0.0
    %88 = vmatprep.subr.mxu0 0.0
    %89 = vmatpush1.msra.mxu0 0.0
    %90 = vmatprep.subr.mxu0 0.0
    %91 = vmatpush1.msra.mxu0 0.0
    %92 = vmatprep.subr.mxu0 0.0
    %93 = vmatpush1.msra.mxu0 0.0
    %94 = vmatprep.subr.mxu0 0.0
    %95 = vmatpush1.msra.mxu0 0.0
    %96 = vmatprep.subr.mxu0 0.0
    %97 = vmatpush1.msra.mxu0 0.0
    %98 = vmatprep.subr.mxu0 0.0
    %99 = vmatpush1.msra.mxu0 0.0
    %100 = vmatprep.subr.mxu0 0.0
    %101 = vmatpush1.msra.mxu0 0.0
    %102 = vmatprep.subr.mxu0 0.0
    %103 = vmatpush1.msra.mxu0 0.0
    %104 = vmatprep.subr.mxu0 0.0
    %105 = vmatpush1.msra.mxu0 0.0
    %106 = vmatprep.subr.mxu0 0.0
    %107 = vmatpush1.msra.mxu0 0.0
    %108 = vmatprep.subr.mxu0 0.0
    %109 = vmatpush1.msra.mxu0 0.0
    %110 = vmatprep.subr.mxu0 0.0
    %111 = vmatpush1.msra.mxu0 0.0
    %112 = vmatprep.mubr.f32.mxu0 0.0
    %113 = vmatmul.mubr.f32.gmra.mrb[0].mxu0 %v41
    %v114 = vpop.f32.mrb[0].mxu0
    %v115 = vadd.f32 0.0, %v114
    %v116 = vpop.f32.mrb[0].mxu0
    %v117 = vadd.f32 0.0, %v116
    %118 = vdwg.mxu0
    %v121 = vcombine.low %v115, %v117
    %v123 = vadd.f32 %v35, %v121
    %124 = vst [vmem:[#allocation2] sm:$0x77] %v123
    %s125 = scalar_lea.vmem [#allocation2], 8
    %v126 = vld [vmem:[%s125] sm:$0x77]
    %s127 = scalar_lea.vmem [#allocation3], 8
    %v128 = vld [vmem:[%s127] sm:$0xff]
    %v130 = vcombine.high %v128, %v128
    %v131 = vsel %vm43, %v128, 0
    %v133 = vsel %vm43, %v130, 0
    %135 = vmatprep.subr.mxu0 %v133
    %136 = vmatpush1.msra.mxu0 %v131
    %137 = vmatprep.subr.mxu0 0.0
    %138 = vmatpush1.msra.mxu0 0.0
    %139 = vmatprep.subr.mxu0 0.0
    %140 = vmatpush1.msra.mxu0 0.0
    %141 = vmatprep.subr.mxu0 0.0
    %142 = vmatpush1.msra.mxu0 0.0
    %143 = vmatprep.subr.mxu0 0.0
    %144 = vmatpush1.msra.mxu0 0.0
    %145 = vmatprep.subr.mxu0 0.0
    %146 = vmatpush1.msra.mxu0 0.0
    %147 = vmatprep.subr.mxu0 0.0
    %148 = vmatpush1.msra.mxu0 0.0
    %149 = vmatprep.subr.mxu0 0.0
    %150 = vmatpush1.msra.mxu0 0.0
    %151 = vmatprep.subr.mxu0 0.0
    %152 = vmatpush1.msra.mxu0 0.0
    %153 = vmatprep.subr.mxu0 0.0
    %154 = vmatpush1.msra.mxu0 0.0
    %155 = vmatprep.subr.mxu0 0.0
    %156 = vmatpush1.msra.mxu0 0.0
    %157 = vmatprep.subr.mxu0 0.0
    %158 = vmatpush1.msra.mxu0 0.0
    %159 = vmatprep.subr.mxu0 0.0
    %160 = vmatpush1.msra.mxu0 0.0
    %161 = vmatprep.subr.mxu0 0.0
    %162 = vmatpush1.msra.mxu0 0.0
    %163 = vmatprep.subr.mxu0 0.0
    %164 = vmatpush1.msra.mxu0 0.0
    %165 = vmatprep.subr.mxu0 0.0
    %166 = vmatpush1.msra.mxu0 0.0
    %167 = vmatprep.subr.mxu0 0.0
    %168 = vmatpush1.msra.mxu0 0.0
    %169 = vmatprep.subr.mxu0 0.0
    %170 = vmatpush1.msra.mxu0 0.0
    %171 = vmatprep.subr.mxu0 0.0
    %172 = vmatpush1.msra.mxu0 0.0
    %173 = vmatprep.subr.mxu0 0.0
    %174 = vmatpush1.msra.mxu0 0.0
    %175 = vmatprep.subr.mxu0 0.0
    %176 = vmatpush1.msra.mxu0 0.0
    %177 = vmatprep.subr.mxu0 0.0
    %178 = vmatpush1.msra.mxu0 0.0
    %179 = vmatprep.subr.mxu0 0.0
    %180 = vmatpush1.msra.mxu0 0.0
    %181 = vmatprep.subr.mxu0 0.0
    %182 = vmatpush1.msra.mxu0 0.0
    %183 = vmatprep.subr.mxu0 0.0
    %184 = vmatpush1.msra.mxu0 0.0
    %185 = vmatprep.subr.mxu0 0.0
    %186 = vmatpush1.msra.mxu0 0.0
    %187 = vmatprep.subr.mxu0 0.0
    %188 = vmatpush1.msra.mxu0 0.0
    %189 = vmatprep.subr.mxu0 0.0
    %190 = vmatpush1.msra.mxu0 0.0
    %191 = vmatprep.subr.mxu0 0.0
    %192 = vmatpush1.msra.mxu0 0.0
    %193 = vmatprep.subr.mxu0 0.0
    %194 = vmatpush1.msra.mxu0 0.0
    %195 = vmatprep.subr.mxu0 0.0
    %196 = vmatpush1.msra.mxu0 0.0
    %197 = vmatprep.subr.mxu0 0.0
    %198 = vmatpush1.msra.mxu0 0.0
    %199 = vmatprep.mubr.f32.mxu0 0.0
    %200 = vmatmul.mubr.f32.gmra.mrb[0].mxu0 %v41
    %v201 = vpop.f32.mrb[0].mxu0
    %v202 = vadd.f32 0.0, %v201
    %v203 = vpop.f32.mrb[0].mxu0
    %v204 = vadd.f32 0.0, %v203
    %205 = vdwg.mxu0
    %v208 = vcombine.low %v202, %v204
    %v210 = vadd.f32 %v126, %v208
    %211 = vst [vmem:[%s125] sm:$0x77] %v210
    // Predicated region
    $region22: #{tpu_custom_call.1} parent=1 // pred_check
      %p212 = pneg %p28
    $region23: #{tpu_custom_call.1} parent=1 // pred_check_branch
      %214 = sbr.rel (%p212) target = $region25
    $region24: #{tpu_custom_call.1} parent=1 // pred_region
      %v215 = vld [vmem:[#allocation2] sm:$0x77]
      %v216 = vld [vmem:[#allocation2 + $0x8] sm:$0x77]
      %v217 = vld [vmem:[%s2] sm:$0x7]
      %219 = vset.pattern.permute.xlu0 0
      %220 = vperm.xlu0 %219, %v217
      %v221 = vpop.permute.xlu0 %220
      %v223 = vunpack.c.l.s4 839922192
      %v224 = vunpack.c.0.s8 %v223
      %v225 = vlaneseq
      %v226 = vshrl.u32 %v225, 7
      %v227 = vsub.s32 %v224, %v226
      %v228 = vrot.slane %v221, %v227
      %v230 = vadd.f32 %v215, %v228
      %v231 = vadd.f32 %v216, %v228
      %232 = vst [vmem:[%s3] sm:$0x77] %v230
      %233 = vst [vmem:[%s3 + $0x8] sm:$0x77] %v231
    $region25: #{tpu_custom_call.1} parent=1 // pred_fallthru
      _
    // Predicated region
    $region26: #{tpu_custom_call.1} parent=1 // pred_check
      _
    $region27: #{tpu_custom_call.1} parent=1 // pred_check_branch
      %235 = sbr.rel (0) target = $region29
    $region28: #{tpu_custom_call.1} parent=1 // pred_region
      _
    $region29: #{tpu_custom_call.1} parent=1 // pred_fallthru
      _
    // Predicated region
    $region30: #{tpu_custom_call.1} parent=1 // pred_check
      _
    $region31: #{tpu_custom_call.1} parent=1 // pred_check_branch
      %237 = sbr.rel (0) target = $region33
    $region32: #{tpu_custom_call.1} parent=1 // pred_region
      _
    $region33: #{tpu_custom_call.1} parent=1 // pred_fallthru
      _
    %238 = vsyncpa [#allocation4], 1

</llo_original>
